<compile_context>
chip_gen: v5e
topology: v5e:2x2
jax: 0.10.0
libtpu: 0.0.40
codegen_flags: <defaults>
</compile_context>

<pallas_src>
import jax
import jax.numpy as jnp
from jax.experimental import pallas as pl
from jax.experimental.pallas import tpu as pltpu


# --------------------------------------------------------------------------
# Fused kernel: one lane-chunk of pixels per grid step, weights resident.
# --------------------------------------------------------------------------
def _decoder_kernel(x_ref, w1_ref, w2_ref, b2_ref, o_ref):
    # x_ref : (Cin+1, L_chunk)  channels-major pixels; last row is ones (b1 fold)
    # w1_ref: (64, Cin+1)       rows ordered (a, b, oc); last col = b1
    # w2_ref: (16, 64)          rows (a, a2, b, b2); block-diag kron(I_4, W2)
    # b2_ref: (1, 1)  SMEM scalar
    # o_ref : (16, L_chunk)     lane-dense output block
    h = jnp.maximum(
        jnp.dot(w1_ref[...], x_ref[...], preferred_element_type=jnp.float32), 0.0)
    y = jnp.dot(w2_ref[...], h, preferred_element_type=jnp.float32)
    o_ref[...] = jnp.maximum(y + b2_ref[0, 0], 0.0).astype(o_ref.dtype)


# --------------------------------------------------------------------------
# One-time weight preparation (hoisted OUT of the per-call hot path).
# --------------------------------------------------------------------------
def prepare_decoder_params(params):
    """Rearrange PyTorch ConvTranspose2d weights once for the fused kernel."""
    w1, b1 = params["w1"], params["b1"]            # (Cin, 16, 2, 2), (16,)
    w2, b2 = params["w2"], params["b2"]            # (16, 1, 2, 2),  (1,)
    cin, c1 = w1.shape[0], w1.shape[1]
    assert w2.shape == (c1, 1, 2, 2), w2.shape     # module fixes Cout2 == 1

    # Layer 1: h[(a,b,oc), pix] = sum_ic W1[ic,oc,a,b] * x[ic,pix] + b1[oc]
    w1t = jnp.transpose(w1, (2, 3, 1, 0)).reshape(4 * c1, cin)       # (64, Cin)
    b1col = jnp.tile(b1, 4).reshape(4 * c1, 1)                       # (64, 1)
    w1aug = jnp.concatenate([w1t, b1col], axis=1)                    # bias folded

    # Layer 2 on the un-reshaped layer-1 activation:
    #   W2big[(a,a2,b,b2), (a',b',c)] = delta(a,a') delta(b,b') W2[c,0,a2,b2]
    w2r = w2[:, 0, :, :]                                             # (c, a2, b2)
    eye2 = jnp.eye(2, dtype=w2.dtype)
    w2big = jnp.einsum("aA,bB,cxy->axbyABc", eye2, eye2, w2r).reshape(16, 4 * c1)

    b2s = b2.reshape(1, 1).astype(jnp.float32)                       # SMEM scalar
    return {"w1aug": w1aug, "w2big": w2big, "b2": b2s}


# --------------------------------------------------------------------------
# Forward (jit this). Matches Decoder.forward: relu(tconv2(relu(tconv1(x)))).
# --------------------------------------------------------------------------
def decoder_forward(x_nchw, prep):
    N, Cin, H, W = x_nchw.shape
    M = H * W
    L = N * M
    w1aug, w2big, b2s = prep["w1aug"], prep["w2big"], prep["b2"]
    assert w1aug.shape[1] == Cin + 1, (w1aug.shape, Cin)

    # Fold batch into lanes: (N,Cin,H,W) -> (Cin, N*M); append a ones row so
    # the layer-1 bias rides the matmul.  Tiny (<10 KiB) relayout, one fusion.
    x_cm = jnp.transpose(x_nchw.reshape(N, Cin, M), (1, 0, 2)).reshape(Cin, L)
    x_aug = jnp.pad(x_cm, ((0, 1), (0, 0)), constant_values=1.0)     # (Cin+1, L)

    # Lane chunking: keep a short "parallel" grid axis (2 chunks -> both TCs on
    # v7x); chunks are multiples of 128 lanes and capped at 8192 (VMEM guard).
    LANE = 128
    assert L % LANE == 0, (L,)
    chunk = L // 2 if L % (2 * LANE) == 0 else L
    chunk = min(chunk, 8192)
    while L % chunk != 0:
        chunk -= LANE
    grid = (L // chunk,)

    y = pl.pallas_call(
        _decoder_kernel,
        out_shape=jax.ShapeDtypeStruct((16, L), jnp.float32),
        grid=grid,
        in_specs=[
            pl.BlockSpec((Cin + 1, chunk), lambda i: (0, i)),         # pixel chunk
            pl.BlockSpec(w1aug.shape, lambda i: (0, 0)),              # resident
            pl.BlockSpec(w2big.shape, lambda i: (0, 0)),              # resident
            pl.BlockSpec(memory_space=pltpu.MemorySpace.SMEM),        # b2 scalar
        ],
        out_specs=pl.BlockSpec((16, chunk), lambda i: (0, i)),
        compiler_params=pltpu.CompilerParams(
            dimension_semantics=("parallel",)),
    )(x_aug, w1aug, w2big, b2s)

    # Pixel unshuffle (single small transpose in the wrapper): rows of y are
    # (dh, dw) sub-pixel offsets, lanes are (n, i, j); out pixel = (4i+dh, 4j+dw).
    y = y.reshape(4, 4, N, H, W)                   # (dh, dw, n, i, j)
    y = jnp.transpose(y, (2, 3, 0, 4, 1))          # (n, i, dh, j, dw)
    return y.reshape(N, 1, 4 * H, 4 * W)


# --------------------------------------------------------------------------
# Params / reference / self-check
# --------------------------------------------------------------------------
def init_params(key):
    k1, k2, k3, k4 = jax.random.split(key, 4)
    # PyTorch ConvTranspose2d weight layout: (in_channels, out_channels, kH, kW)
    w1 = jax.random.normal(k1, (4, 16, 2, 2), jnp.float32) * 0.1
    b1 = jax.random.normal(k2, (16,), jnp.float32) * 0.1
    w2 = jax.random.normal(k3, (16, 1, 2, 2), jnp.float32) * 0.1
    b2 = jax.random.normal(k4, (1,), jnp.float32) * 0.1
    return {"w1": w1, "b1": b1, "w2": w2, "b2": b2}


def _reference(x_nchw, p):
    """Pure-jnp reference of the same ConvTranspose2d math (sanity check)."""
    def tconv(x, w, b):  # x NCHW, w (Cin, Cout, 2, 2)
        y = jnp.einsum("nchw,cdab->ndhawb", x, w)         # (N,Cout,H,2,W,2)
        n, co, hh, a, ww, bb = y.shape
        y = y.reshape(n, co, hh * a, ww * bb) + b[None, :, None, None]
        return jnp.maximum(y, 0.0)
    x = tconv(x_nchw, p["w1"], p["b1"])
    x = tconv(x, p["w2"], p["b2"])
    return x


if __name__ == "__main__":
    key = jax.random.PRNGKey(0)
    kx, kp = jax.random.split(key)
    x = jax.random.normal(kx, (2, 4, 16, 16), jnp.float32)   # NCHW, like PyTorch
    params = init_params(kp)

    # Weight prep runs ONCE, outside the jit'd hot loop.
    prep = jax.tree_util.tree_map(jax.block_until_ready, prepare_decoder_params(params))

    fwd = jax.jit(decoder_forward)
    out = jax.block_until_ready(fwd(x, prep))
    assert out.shape == (2, 1, 64, 64), out.shape

    ref = _reference(x, params)
    assert jnp.allclose(out, ref, atol=1e-5, rtol=1e-5), float(
        jnp.max(jnp.abs(out - ref)))

    print("KERNEL_OK")
</pallas_src>

<mosaic_0001>
module attributes {stable_mosaic.version = 11 : i64} {
  func.func @_decoder_kernel(%arg0: i32, %arg1: memref<5x256xf32, #tpu.memory_space<vmem>>, %arg2: memref<64x5xf32, #tpu.memory_space<vmem>>, %arg3: memref<16x64xf32, #tpu.memory_space<vmem>>, %arg4: memref<1x1xf32, #tpu.memory_space<smem>>, %arg5: memref<16x256xf32, #tpu.memory_space<vmem>>) attributes {dimension_semantics = [#tpu.dimension_semantics<parallel>], iteration_bounds = array<i64: 2>, scalar_prefetch = 0 : i64, scratch_operands = 0 : i64, tpu.core_type = #tpu.core_type<tc>, window_params = [{transform_indices = @transform_0, window_bounds = array<i64: 5, 256>}, {pipeline_mode = #tpu.pipeline_mode<synchronous>, transform_indices = @transform_1, window_bounds = array<i64: 64, 5>}, {pipeline_mode = #tpu.pipeline_mode<synchronous>, transform_indices = @transform_2, window_bounds = array<i64: 16, 64>}, {transform_indices = @transform_3, window_bounds = array<i64: 1, 1>}, {transform_indices = @transform_4, window_bounds = array<i64: 16, 256>}]} {
    %c0 = arith.constant 0 : index
    %c0_0 = arith.constant 0 : index
    %0 = vector.load %arg2[%c0, %c0_0] : memref<64x5xf32, #tpu.memory_space<vmem>>, vector<64x5xf32>
    %c0_1 = arith.constant 0 : index
    %c0_2 = arith.constant 0 : index
    %1 = vector.load %arg1[%c0_1, %c0_2] : memref<5x256xf32, #tpu.memory_space<vmem>>, vector<5x256xf32>
    %cst = arith.constant dense<0.000000e+00> : vector<64x256xf32>
    %2 = tpu.matmul %0, %1, %cst {dimension_numbers = #tpu.dot_dimension_numbers<[1], [0], [0], [1], [0, 0, 1, 1], [], []>} : vector<64x5xf32>, vector<5x256xf32>, vector<64x256xf32> -> vector<64x256xf32>
    %cst_3 = arith.constant 0.000000e+00 : f32
    %3 = vector.broadcast %cst_3 : f32 to vector<64x256xf32>
    %4 = arith.maximumf %2, %3 : vector<64x256xf32>
    %c0_4 = arith.constant 0 : index
    %c0_5 = arith.constant 0 : index
    %5 = vector.load %arg3[%c0_4, %c0_5] : memref<16x64xf32, #tpu.memory_space<vmem>>, vector<16x64xf32>
    %cst_6 = arith.constant dense<0.000000e+00> : vector<16x256xf32>
    %6 = tpu.matmul %5, %4, %cst_6 {dimension_numbers = #tpu.dot_dimension_numbers<[1], [0], [0], [1], [0, 0, 1, 1], [], []>} : vector<16x64xf32>, vector<64x256xf32>, vector<16x256xf32> -> vector<16x256xf32>
    %c0_7 = arith.constant 0 : index
    %c0_8 = arith.constant 0 : index
    %7 = memref.load %arg4[%c0_7, %c0_8] : memref<1x1xf32, #tpu.memory_space<smem>>
    %8 = vector.broadcast %7 : f32 to vector<16x256xf32>
    %9 = arith.addf %6, %8 : vector<16x256xf32>
    %cst_9 = arith.constant 0.000000e+00 : f32
    %10 = vector.broadcast %cst_9 : f32 to vector<16x256xf32>
    %11 = arith.maximumf %9, %10 : vector<16x256xf32>
    %c0_10 = arith.constant 0 : index
    %c0_11 = arith.constant 0 : index
    %12 = vector.load %arg5[%c0_10, %c0_11] : memref<16x256xf32, #tpu.memory_space<vmem>>, vector<16x256xf32>
    tpu.vector_store %arg5[%c0_10, %c0_11], %11 {strides = array<i32>} : memref<16x256xf32, #tpu.memory_space<vmem>>, vector<16x256xf32>,
    return
  }
  func.func @transform_0(%arg0: i32) -> (i32, i32) {
    %c0_i32 = arith.constant 0 : i32
    %c0_i32_0 = arith.constant 0 : i32
    return %c0_i32, %arg0 : i32, i32
  }
  func.func @transform_1(%arg0: i32) -> (i32, i32) {
    %c0_i32 = arith.constant 0 : i32
    %c0_i32_0 = arith.constant 0 : i32
    %c0_i32_1 = arith.constant 0 : i32
    return %c0_i32, %c0_i32_0 : i32, i32
  }
  func.func @transform_2(%arg0: i32) -> (i32, i32) {
    %c0_i32 = arith.constant 0 : i32
    %c0_i32_0 = arith.constant 0 : i32
    %c0_i32_1 = arith.constant 0 : i32
    return %c0_i32, %c0_i32_0 : i32, i32
  }
  func.func @transform_3(%arg0: i32) -> (i32, i32) {
    %c0_i32 = arith.constant 0 : i32
    %c0_i32_0 = arith.constant 0 : i32
    %c0_i32_1 = arith.constant 0 : i32
    return %c0_i32, %c0_i32_0 : i32, i32
  }
  func.func @transform_4(%arg0: i32) -> (i32, i32) {
    %c0_i32 = arith.constant 0 : i32
    %c0_i32_0 = arith.constant 0 : i32
    return %c0_i32, %arg0 : i32, i32
  }
}

</mosaic_0001>

<llo_original>
// kernel: decoder_forward.1
$region0: #{decoder_forward.1}
  #allocation0 [shape = 'u32[]', space=smem, size = 0x4, offset = 0x4, fixed_abs, tag = 'smem constant byte address 0x4 - core index']
  #allocation1 [shape = 'u32[72,128]{1,0:T(1,128)}', space=vmem, size = 0x9000, scoped, tag = 'internal scratch']
  #allocation2 [shape = 'f32[1,1]{1,0:T(1,128)S(6)}', space=smem, size = 0x200, scoped, tag = 'scoped memory for decoder_forward.1']
  %s0 = inlined_call_operand.vmem [shape: f32[5,512], index: 0, kind: input, shape index: {}]
  %s1 = inlined_call_operand.vmem [shape: f32[64,5], index: 1, kind: input, shape index: {}]
  %s2 = inlined_call_operand.vmem [shape: f32[16,64], index: 2, kind: input, shape index: {}]
  %s3 = inlined_call_operand.<no memory space> [shape: f32[1,1], index: 3, kind: input, shape index: {}]
  %s4 = inlined_call_operand.vmem [shape: f32[16,512], index: 4, kind: output, shape index: {}]
  %s5 = sld [smem:[#allocation0]]
  $region68: #{decoder_forward.1} parent=0
    _
  %s7 = ssub.s32 1, %s5
  %s8 = scalar_select 0, %s7, %s5
  %9 = sst [smem:[#allocation2]] %s3
  $region1: #{decoder_forward.1} parent=0
    #allocation3 [shape = 'u8[32768]{0}', space=vmem, size = 0x8000, scoped, tag = 'output window, operand 0']
    loop: start=0, step=1, limit=4
    $region2: #{decoder_forward.1} parent=1 // loop_pre_header
      _
    $region3: #{decoder_forward.1} parent=1 // loop_header
      %s11 = sphi 0, %s15
      %p12 = scmp.ge.s32.totalorder %s11, 4
      %s21 = sphi 0, %s23
      %s24 = sphi 0, %s21
      %s25 = sphi 0, %s24
      %s41 = sphi 0, %s25
      %s45 = sphi 0, %s45
      %s47 = sphi 0, %s45
      %s48 = sphi 0, %s47
      %s62 = sphi 0, %s48
      %s66 = sphi 0, %s66
      %s68 = sphi 0, %s66
      %s69 = sphi 0, %s68
      %s83 = sphi 0, %s69
      %s87 = sphi 0, %s87
      %s89 = sphi 0, %s87
      %s90 = sphi 0, %s89
      %s104 = sphi 0, %s90
      %s110 = sphi 0, %s112
      %s113 = sphi 0, %s110
      %s114 = sphi 0, %s113
      %s130 = sphi 0, %s114
    $region4: #{decoder_forward.1} parent=1 // loop_header_branch
      %14 = sbr.rel (%p12) target = $region8
    $region5: #{decoder_forward.1} parent=1 // loop_body
      %s16 = ssub.s32 %s11, 1
      %s17 = ssub.s32 %s11, 2
      %s18 = sadd.s32 %s11, 1
      %s19 = ssub.s32 %s11, %s18
      %p20 = scmp.eq.s32.totalorder %s19, 0
      %s22 = sadd.s32 %s21, 1
      %s23 = scalar_select %p20, %s21, %s22
      %p26 = pneg %p20
      %p27 = scmp.eq.s32.totalorder %s11, 1
      %p28 = por %p26, %p27
      %p29 = scmp.ne.s32.totalorder %s21, %s24
      %p30 = scmp.eq.s32.totalorder %s11, 0
      %p31 = por %p29, %p30
      %p32 = scmp.ne.s32.totalorder %s21, %s24
      %p33 = scmp.eq.s32.totalorder %s16, 1
      %p34 = por %p32, %p33
      %p35 = scmp.ne.s32.totalorder %s24, %s25
      %p36 = scmp.eq.s32.totalorder %s16, 0
      %p37 = por %p35, %p36
      %p38 = scmp.ne.s32.totalorder %s24, %s25
      %p39 = scmp.eq.s32.totalorder %s17, 1
      %p40 = por %p38, %p39
      %p42 = scmp.ne.s32.totalorder %s25, %s41
      %p43 = scmp.eq.s32.totalorder %s17, 0
      %p44 = por %p42, %p43
      %s46 = sadd.s32 %s45, 1
      %p49 = scmp.eq.s32.totalorder %s11, 1
      %p50 = scmp.ne.s32.totalorder %s45, %s47
      %p51 = scmp.eq.s32.totalorder %s11, 0
      %p52 = por %p50, %p51
      %p53 = scmp.ne.s32.totalorder %s45, %s47
      %p54 = scmp.eq.s32.totalorder %s16, 1
      %p55 = por %p53, %p54
      %p56 = scmp.ne.s32.totalorder %s47, %s48
      %p57 = scmp.eq.s32.totalorder %s16, 0
      %p58 = por %p56, %p57
      %p59 = scmp.ne.s32.totalorder %s47, %s48
      %p60 = scmp.eq.s32.totalorder %s17, 1
      %p61 = por %p59, %p60
      %p63 = scmp.ne.s32.totalorder %s48, %s62
      %p64 = scmp.eq.s32.totalorder %s17, 0
      %p65 = por %p63, %p64
      %s67 = sadd.s32 %s66, 1
      %p70 = scmp.eq.s32.totalorder %s11, 1
      %p71 = scmp.ne.s32.totalorder %s66, %s68
      %p72 = scmp.eq.s32.totalorder %s11, 0
      %p73 = por %p71, %p72
      %p74 = scmp.ne.s32.totalorder %s66, %s68
      %p75 = scmp.eq.s32.totalorder %s16, 1
      %p76 = por %p74, %p75
      %p77 = scmp.ne.s32.totalorder %s68, %s69
      %p78 = scmp.eq.s32.totalorder %s16, 0
      %p79 = por %p77, %p78
      %p80 = scmp.ne.s32.totalorder %s68, %s69
      %p81 = scmp.eq.s32.totalorder %s17, 1
      %p82 = por %p80, %p81
      %p84 = scmp.ne.s32.totalorder %s69, %s83
      %p85 = scmp.eq.s32.totalorder %s17, 0
      %p86 = por %p84, %p85
      %s88 = sadd.s32 %s87, 1
      %p91 = scmp.eq.s32.totalorder %s11, 1
      %p92 = scmp.ne.s32.totalorder %s87, %s89
      %p93 = scmp.eq.s32.totalorder %s11, 0
      %p94 = por %p92, %p93
      %p95 = scmp.ne.s32.totalorder %s87, %s89
      %p96 = scmp.eq.s32.totalorder %s16, 1
      %p97 = por %p95, %p96
      %p98 = scmp.ne.s32.totalorder %s89, %s90
      %p99 = scmp.eq.s32.totalorder %s16, 0
      %p100 = por %p98, %p99
      %p101 = scmp.ne.s32.totalorder %s89, %s90
      %p102 = scmp.eq.s32.totalorder %s17, 1
      %p103 = por %p101, %p102
      %p105 = scmp.ne.s32.totalorder %s90, %s104
      %p106 = scmp.eq.s32.totalorder %s17, 0
      %p107 = por %p105, %p106
      %s108 = ssub.s32 %s11, %s18
      %p109 = scmp.eq.s32.totalorder %s108, 0
      %s111 = sadd.s32 %s110, 1
      %s112 = scalar_select %p109, %s110, %s111
      %p115 = pneg %p109
      %p116 = scmp.eq.s32.totalorder %s11, 1
      %p117 = por %p115, %p116
      %p118 = scmp.ne.s32.totalorder %s110, %s113
      %p119 = scmp.eq.s32.totalorder %s11, 0
      %p120 = por %p118, %p119
      %p121 = scmp.ne.s32.totalorder %s110, %s113
      %p122 = scmp.eq.s32.totalorder %s16, 1
      %p123 = por %p121, %p122
      %p124 = scmp.ne.s32.totalorder %s113, %s114
      %p125 = scmp.eq.s32.totalorder %s16, 0
      %p126 = por %p124, %p125
      %p127 = scmp.ne.s32.totalorder %s113, %s114
      %p128 = scmp.eq.s32.totalorder %s17, 1
      %p129 = por %p127, %p128
      %p131 = scmp.ne.s32.totalorder %s114, %s130
      %p132 = scmp.eq.s32.totalorder %s17, 0
      %p133 = por %p131, %p132
      %p134 = scmp.le.s32.totalorder 1, %s11
      %p135 = scmp.lt.s32.totalorder %s11, 3
      %p136 = pnand %p134, %p135
      %p137 = pneg %p136
      // Predicated region
      $region9: #{decoder_forward.1} parent=5 // pred_check
        _
      $region10: #{decoder_forward.1} parent=5 // pred_check_branch
        %139 = sbr.rel (%p136) target = $region12
      $region11: #{decoder_forward.1} parent=5 // pred_region
        %s140 = ssub.s32 %s11, 1
        // Predicated region
        $region13: #{decoder_forward.1} parent=11 // pred_check
          %p141 = pneg %p58
        $region14: #{decoder_forward.1} parent=11 // pred_check_branch
          %143 = sbr.rel (%p141) target = $region16
        $region15: #{decoder_forward.1} parent=11 // pred_region
          _
        $region16: #{decoder_forward.1} parent=11 // pred_fallthru
          _
        // Predicated region
        $region17: #{decoder_forward.1} parent=11 // pred_check
          %p144 = pneg %p79
        $region18: #{decoder_forward.1} parent=11 // pred_check_branch
          %146 = sbr.rel (%p144) target = $region20
        $region19: #{decoder_forward.1} parent=11 // pred_region
          _
        $region20: #{decoder_forward.1} parent=11 // pred_fallthru
          _
        // Predicated region
        $region21: #{decoder_forward.1} parent=11 // pred_check
          %p147 = pneg %p100
        $region22: #{decoder_forward.1} parent=11 // pred_check_branch
          %149 = sbr.rel (%p147) target = $region24
        $region23: #{decoder_forward.1} parent=11 // pred_region
          _
        $region24: #{decoder_forward.1} parent=11 // pred_fallthru
          _
      $region12: #{decoder_forward.1} parent=5 // pred_fallthru
        _
      %p150 = scmp.lt.s32.totalorder %s11, 2
      // Predicated region
      $region25: #{decoder_forward.1} parent=5 // pred_check
        %p151 = pneg %p150
      $region26: #{decoder_forward.1} parent=5 // pred_check_branch
        %153 = sbr.rel (%p151) target = $region28
      $region27: #{decoder_forward.1} parent=5 // pred_region
        // Predicated region
        $region29: #{decoder_forward.1} parent=27 // pred_check
          %p154 = pneg %p31
        $region30: #{decoder_forward.1} parent=27 // pred_check_branch
          %156 = sbr.rel (%p154) target = $region32
        $region31: #{decoder_forward.1} parent=27 // pred_region
          %s157 = smul.u32 2, %s11
          %p158 = scmp.lt.s32.totalorder %s157, 3
          %s159 = scalar_select %p158, %s157, 3
          %s160 = smul.addr %s159, 8
          %s161 = scalar_lea.vmem %s0, %s160
          %s162 = smul.u32 2, %s11
        $region32: #{decoder_forward.1} parent=27 // pred_fallthru
          _
      $region28: #{decoder_forward.1} parent=5 // pred_fallthru
        _
      %p163 = scmp.le.s32.totalorder 1, %s11
      %p164 = scmp.lt.s32.totalorder %s11, 3
      %p165 = pnand %p163, %p164
      %p166 = pneg %p165
      // Predicated region
      $region33: #{decoder_forward.1} parent=5 // pred_check
        _
      $region34: #{decoder_forward.1} parent=5 // pred_check_branch
        %168 = sbr.rel (%p165) target = $region36
      $region35: #{decoder_forward.1} parent=5 // pred_region
        %s169 = ssub.s32 %s11, 1
        %s170 = smul.u32 2, %s16
        %p171 = scmp.lt.s32.totalorder %s170, 3
        %s172 = scalar_select %p171, %s170, 3
        %s173 = smul.addr %s172, 8
        %s174 = scalar_lea.vmem %s0, %s173
        %p175 = pneg %p37
        %p176 = pneg %p34
        %p177 = pneg %p58
        %p178 = pneg %p55
        %p179 = pneg %p79
        %p180 = pneg %p76
        %p181 = pneg %p100
        %p182 = pneg %p97
        %p183 = pneg %p126
        %p184 = pneg %p123
        %s185 = sand.u32 %s113, 1
        %s186 = sand.u32 %s113, 1
        %s187 = smul.addr %s186, 32
        %s188 = scalar_lea.vmem [#allocation3], %s187
        %s189 = smul.u32 2, %s16
        %p190 = scmp.lt.s32.totalorder %s189, 3
        %s191 = scalar_select %p190, %s189, 3
        %s192 = smul.addr %s191, 8
        %s193 = scalar_lea.vmem %s0, %s192
        %s194 = smul.u32 2, %s16
        %s195 = smul.u32 2, %s16
        %v196 = vld [vmem:[%s1] sm:$0xff]
        %v197 = vld [vmem:[%s1 + $0x8] sm:$0xff]
        %v198 = vld [vmem:[%s1 + $0x10] sm:$0xff]
        %v199 = vld [vmem:[%s1 + $0x18] sm:$0xff]
        %v200 = vld [vmem:[%s1 + $0x20] sm:$0xff]
        %v201 = vld [vmem:[%s1 + $0x28] sm:$0xff]
        %v202 = vld [vmem:[%s1 + $0x30] sm:$0xff]
        %v203 = vld [vmem:[%s1 + $0x38] sm:$0xff]
        %v204 = vld [vmem:[%s193] sm:$0x1f]
        %v205 = vld [vmem:[%s193 + $0x8] sm:$0x1f]
        %vm206 = vcmask 39936
        %v208 = vsel %vm206, %v196, 0
        %v211 = vsel %vm206, %v197, 0
        %v214 = vsel %vm206, %v198, 0
        %v217 = vsel %vm206, %v199, 0
        %v220 = vsel %vm206, %v200, 0
        %v223 = vsel %vm206, %v201, 0
        %v226 = vsel %vm206, %v202, 0
        %v229 = vsel %vm206, %v203, 0
        %vm231 = vcmask 1044480
        %v233 = vsel %vm231, %v204, 0
        %v236 = vsel %vm231, %v205, 0
        %238 = vmatpush.msra.mxu0 0.0
        %239 = vmatpush.msra.mxu0 0.0
        %240 = vmatpush.msra.mxu0 0.0
        %241 = vmatpush.msra.mxu0 0.0
        %242 = vmatpush.msra.mxu0 0.0
        %243 = vmatpush.msra.mxu0 0.0
        %244 = vmatpush.msra.mxu0 0.0
        %245 = vmatpush.msra.mxu0 0.0
        %246 = vmatpush.msra.mxu0 0.0
        %247 = vmatpush.msra.mxu0 0.0
        %248 = vmatpush.msra.mxu0 0.0
        %249 = vmatpush.msra.mxu0 0.0
        %250 = vmatpush.msra.mxu0 0.0
        %251 = vmatpush.msra.mxu0 0.0
        %252 = vmatpush.msra.mxu0 0.0
        %253 = vmatpush.msra.mxu0 %v233
        %254 = vmatmul.f32.gmra.mxu0 %v208
        %v255 = vpop.f32.mrf.mxu0
        %v256 = vadd.f32 0.0, %v255
        %257 = vmatmul.f32.gmra.mxu0 %v211
        %v258 = vpop.f32.mrf.mxu0
        %v259 = vadd.f32 0.0, %v258
        %260 = vmatmul.f32.gmra.mxu0 %v214
        %v261 = vpop.f32.mrf.mxu0
        %v262 = vadd.f32 0.0, %v261
        %263 = vmatmul.f32.gmra.mxu0 %v217
        %v264 = vpop.f32.mrf.mxu0
        %v265 = vadd.f32 0.0, %v264
        %266 = vmatmul.f32.gmra.mxu0 %v220
        %v267 = vpop.f32.mrf.mxu0
        %v268 = vadd.f32 0.0, %v267
        %269 = vmatmul.f32.gmra.mxu0 %v223
        %v270 = vpop.f32.mrf.mxu0
        %v271 = vadd.f32 0.0, %v270
        %272 = vmatmul.f32.gmra.mxu0 %v226
        %v273 = vpop.f32.mrf.mxu0
        %v274 = vadd.f32 0.0, %v273
        %275 = vmatmul.f32.gmra.mxu0 %v229
        %v276 = vpop.f32.mrf.mxu0
        %v277 = vadd.f32 0.0, %v276
        %278 = vdwg.mxu0
        %279 = vmatpush.msra.mxu0 0.0
        %280 = vmatpush.msra.mxu0 0.0
        %281 = vmatpush.msra.mxu0 0.0
        %282 = vmatpush.msra.mxu0 0.0
        %283 = vmatpush.msra.mxu0 0.0
        %284 = vmatpush.msra.mxu0 0.0
        %285 = vmatpush.msra.mxu0 0.0
        %286 = vmatpush.msra.mxu0 0.0
        %287 = vmatpush.msra.mxu0 0.0
        %288 = vmatpush.msra.mxu0 0.0
        %289 = vmatpush.msra.mxu0 0.0
        %290 = vmatpush.msra.mxu0 0.0
        %291 = vmatpush.msra.mxu0 0.0
        %292 = vmatpush.msra.mxu0 0.0
        %293 = vmatpush.msra.mxu0 0.0
        %294 = vmatpush.msra.mxu0 %v236
        %295 = vmatmul.f32.gmra.mxu0 %v208
        %v296 = vpop.f32.mrf.mxu0
        %v297 = vadd.f32 0.0, %v296
        %298 = vmatmul.f32.gmra.mxu0 %v211
        %v299 = vpop.f32.mrf.mxu0
        %v300 = vadd.f32 0.0, %v299
        %301 = vmatmul.f32.gmra.mxu0 %v214
        %v302 = vpop.f32.mrf.mxu0
        %v303 = vadd.f32 0.0, %v302
        %304 = vmatmul.f32.gmra.mxu0 %v217
        %v305 = vpop.f32.mrf.mxu0
        %v306 = vadd.f32 0.0, %v305
        %307 = vmatmul.f32.gmra.mxu0 %v220
        %v308 = vpop.f32.mrf.mxu0
        %v309 = vadd.f32 0.0, %v308
        %310 = vmatmul.f32.gmra.mxu0 %v223
        %v311 = vpop.f32.mrf.mxu0
        %v312 = vadd.f32 0.0, %v311
        %313 = vmatmul.f32.gmra.mxu0 %v226
        %v314 = vpop.f32.mrf.mxu0
        %v315 = vadd.f32 0.0, %v314
        %316 = vmatmul.f32.gmra.mxu0 %v229
        %v317 = vpop.f32.mrf.mxu0
        %v318 = vadd.f32 0.0, %v317
        %319 = vdwg.mxu0
        %v320 = vmax.f32 %v256, 0.0
        %v321 = vmax.f32 %v297, 0.0
        %v322 = vmax.f32 %v259, 0.0
        %v323 = vmax.f32 %v300, 0.0
        %v324 = vmax.f32 %v262, 0.0
        %v325 = vmax.f32 %v303, 0.0
        %v326 = vmax.f32 %v265, 0.0
        %v327 = vmax.f32 %v306, 0.0
        %v328 = vmax.f32 %v268, 0.0
        %v329 = vmax.f32 %v309, 0.0
        %v330 = vmax.f32 %v271, 0.0
        %v331 = vmax.f32 %v312, 0.0
        %v332 = vmax.f32 %v274, 0.0
        %v333 = vmax.f32 %v315, 0.0
        %v334 = vmax.f32 %v277, 0.0
        %v335 = vmax.f32 %v318, 0.0
        %v336 = vld [vmem:[%s2] sm:$0xff]
        %v337 = vld [vmem:[%s2 + $0x8] sm:$0xff]
        %s338 = sld [smem:[#allocation2]]
        %v339 = vstv %s338
        %vm340 = vcmask 523264
        %v342 = vsel %vm340, %v336, 0
        %v345 = vsel %vm340, %v337, 0
        %347 = vmatpush.msra.mxu0 0.0
        %348 = vmatpush.msra.mxu0 0.0
        %349 = vmatpush.msra.mxu0 0.0
        %350 = vmatpush.msra.mxu0 0.0
        %351 = vmatpush.msra.mxu0 0.0
        %352 = vmatpush.msra.mxu0 0.0
        %353 = vmatpush.msra.mxu0 0.0
        %354 = vmatpush.msra.mxu0 0.0
        %355 = vmatpush.msra.mxu0 %v334
        %356 = vmatpush.msra.mxu0 %v332
        %357 = vmatpush.msra.mxu0 %v330
        %358 = vmatpush.msra.mxu0 %v328
        %359 = vmatpush.msra.mxu0 %v326
        %360 = vmatpush.msra.mxu0 %v324
        %361 = vmatpush.msra.mxu0 %v322
        %362 = vmatpush.msra.mxu0 %v320
        %363 = vmatmul.f32.gmra.mxu0 %v342
        %v364 = vpop.f32.mrf.mxu0
        %v365 = vadd.f32 %v339, %v364
        %366 = vmatmul.f32.gmra.mxu0 %v345
        %v367 = vpop.f32.mrf.mxu0
        %v368 = vadd.f32 %v339, %v367
        %369 = vdwg.mxu0
        %370 = vmatpush.msra.mxu0 0.0
        %371 = vmatpush.msra.mxu0 0.0
        %372 = vmatpush.msra.mxu0 0.0
        %373 = vmatpush.msra.mxu0 0.0
        %374 = vmatpush.msra.mxu0 0.0
        %375 = vmatpush.msra.mxu0 0.0
        %376 = vmatpush.msra.mxu0 0.0
        %377 = vmatpush.msra.mxu0 0.0
        %378 = vmatpush.msra.mxu0 %v335
        %379 = vmatpush.msra.mxu0 %v333
        %380 = vmatpush.msra.mxu0 %v331
        %381 = vmatpush.msra.mxu0 %v329
        %382 = vmatpush.msra.mxu0 %v327
        %383 = vmatpush.msra.mxu0 %v325
        %384 = vmatpush.msra.mxu0 %v323
        %385 = vmatpush.msra.mxu0 %v321
        %386 = vmatmul.f32.gmra.mxu0 %v342
        %v387 = vpop.f32.mrf.mxu0
        %v388 = vadd.f32 %v339, %v387
        %389 = vmatmul.f32.gmra.mxu0 %v345
        %v390 = vpop.f32.mrf.mxu0
        %v391 = vadd.f32 %v339, %v390
        %392 = vdwg.mxu0
        %v393 = vmax.f32 %v365, 0.0
        %v394 = vmax.f32 %v388, 0.0
        %v395 = vmax.f32 %v368, 0.0
        %v396 = vmax.f32 %v391, 0.0
        %397 = vst [vmem:[%s188] sm:$0xff] %v393
        %398 = vst [vmem:[%s188 + $0x8] sm:$0xff] %v394
        %399 = vst [vmem:[%s188 + $0x10] sm:$0xff] %v395
        %400 = vst [vmem:[%s188 + $0x18] sm:$0xff] %v396
        %s401 = sand.u32 %s113, 1
        %s402 = sand.u32 %s113, 1
        %s403 = smul.addr %s402, 32
        %s404 = scalar_lea.vmem [#allocation3], %s403
        // Predicated region
        $region37: #{decoder_forward.1} parent=35 // pred_check
          %p405 = pneg %p123
        $region38: #{decoder_forward.1} parent=35 // pred_check_branch
          %407 = sbr.rel (%p405) target = $region40
        $region39: #{decoder_forward.1} parent=35 // pred_region
          %s408 = smul.u32 2, %s16
          %s409 = smul.addr %s408, 8
          %s410 = scalar_lea.vmem %s4, %s409
          // Predicated region
          $region41: #{decoder_forward.1} parent=39 // pred_check
            _
          $region42: #{decoder_forward.1} parent=39 // pred_check_branch
            %412 = sbr.rel (0) target = $region44
          $region43: #{decoder_forward.1} parent=39 // pred_region
            // Predicated region
            $region45: #{decoder_forward.1} parent=43 // pred_check
              _
            $region46: #{decoder_forward.1} parent=43 // pred_check_branch
              %414 = sbr.rel (0) target = $region48
            $region47: #{decoder_forward.1} parent=43 // pred_region
              loop: start=0, step=1, limit=1
              $region49: #{decoder_forward.1} parent=47 // loop_pre_header
                _
              $region50: #{decoder_forward.1} parent=47 // loop_header
                %s416 = sphi 0, %s420
                %p417 = scmp.ge.s32.totalorder %s416, 1
                %s421 = sphi %s404, %s404
                %s422 = sphi %s410, %s410
              $region51: #{decoder_forward.1} parent=47 // loop_header_branch
                %419 = sbr.rel (%p417) target = $region55
              $region52: #{decoder_forward.1} parent=47 // loop_body
                %v423 = vld [vmem:[%s421] sm:$0xff]
                %424 = vst [vmem:[%s422] sm:$0xff] %v423
                %v425 = vld [vmem:[%s421 + $0x8] sm:$0xff]
                %426 = vst [vmem:[%s422 + $0x8] sm:$0xff] %v425
                %v427 = vld [vmem:[%s421 + $0x10] sm:$0xff]
                %428 = vst [vmem:[%s422 + $0x20] sm:$0xff] %v427
                %v429 = vld [vmem:[%s421 + $0x18] sm:$0xff]
                %430 = vst [vmem:[%s422 + $0x28] sm:$0xff] %v429
              $region53: #{decoder_forward.1} parent=47 // loop_footer
                %s420 = sadd.s32 1, %s416
              $region54: #{decoder_forward.1} parent=47 // loop_footer_branch
                %415 = sbr.rel target = $region50
              $region55: #{decoder_forward.1} parent=47 // loop_exit
                _
            $region48: #{decoder_forward.1} parent=43 // pred_fallthru
              _
            // Predicated region
            $region56: #{decoder_forward.1} parent=43 // pred_check
              _
            $region57: #{decoder_forward.1} parent=43 // pred_check_branch
              %432 = sbr.rel target = $region59
            $region58: #{decoder_forward.1} parent=43 // pred_region
              _
            $region59: #{decoder_forward.1} parent=43 // pred_fallthru
              _
          $region44: #{decoder_forward.1} parent=39 // pred_fallthru
            _
          %433 = vnop
        $region40: #{decoder_forward.1} parent=35 // pred_fallthru
          _
      $region36: #{decoder_forward.1} parent=5 // pred_fallthru
        _
      %p434 = scmp.le.s32.totalorder 2, %s11
      // Predicated region
      $region60: #{decoder_forward.1} parent=5 // pred_check
        %p435 = pneg %p434
      $region61: #{decoder_forward.1} parent=5 // pred_check_branch
        %437 = sbr.rel (%p435) target = $region63
      $region62: #{decoder_forward.1} parent=5 // pred_region
        %s438 = ssub.s32 %s11, 2
        // Predicated region
        $region64: #{decoder_forward.1} parent=62 // pred_check
          %p439 = pneg %p129
        $region65: #{decoder_forward.1} parent=62 // pred_check_branch
          %441 = sbr.rel (%p439) target = $region67
        $region66: #{decoder_forward.1} parent=62 // pred_region
          %s442 = sand.u32 %s114, 1
          %s443 = sand.u32 %s114, 1
          %s444 = smul.addr %s443, 32
          %s445 = scalar_lea.vmem [#allocation3], %s444
        $region67: #{decoder_forward.1} parent=62 // pred_fallthru
          _
      $region63: #{decoder_forward.1} parent=5 // pred_fallthru
        _
    $region6: #{decoder_forward.1} parent=1 // loop_footer
      %s15 = sadd.s32 1, %s11
    $region7: #{decoder_forward.1} parent=1 // loop_footer_branch
      %10 = sbr.rel target = $region3
    $region8: #{decoder_forward.1} parent=1 // loop_exit
      _

</llo_original>
